<compile_context>
chip_gen: v5e
topology: v5e:2x2
jax: 0.10.0
libtpu: 0.0.40
codegen_flags: <defaults>
</compile_context>

<pallas_src>
import functools

import jax
import jax.numpy as jnp
from jax.experimental import pallas as pl
from jax.experimental.pallas import tpu as pltpu


def _ceil_to(x, m):
    return ((x + m - 1) // m) * m


def channel_attention_kernel(x_ref, w1_ref, w2_ref, o_ref, acc_ref, *, inv_hw):
    # x_ref : (b_tile, C_pad, hw_tile)   w1_ref : (C_pad, Cr_pad)
    # w2_ref: (Cr_pad, C_pad)            o_ref  : (b_tile, C_pad)
    # acc_ref: (b_tile, C_pad) f32 scratch, persists across the HW grid axis.
    k = pl.program_id(1)

    @pl.when(k == 0)
    def _():
        acc_ref[...] = jnp.zeros_like(acc_ref)

    # Partial spatial sum for this HW tile (accumulate in f32).
    acc_ref[...] += jnp.sum(x_ref[...].astype(jnp.float32), axis=-1)

    @pl.when(k == pl.num_programs(1) - 1)
    def _():
        # Both branches are avg-pool -> out = 2 * mlp(avg).  Fold the factor 2
        # and 1/HW into one scalar multiply on the tiny pooled vector (exact:
        # ReLU is positive-homogeneous).
        pooled = acc_ref[...] * (2.0 * inv_hw)                     # (b_tile, C_pad)
        h = jnp.dot(pooled, w1_ref[...],
                    preferred_element_type=jnp.float32)            # (b_tile, Cr_pad)
        h = jnp.maximum(h, 0.0)                                    # ReLU
        out = jnp.dot(h, w2_ref[...],
                      preferred_element_type=jnp.float32)          # (b_tile, C_pad)
        o_ref[...] = jax.nn.sigmoid(out).astype(o_ref.dtype)


def channel_attention(x, w_fc1, w_fc2, *, hw_tile=512, b_tile=None):
    """x: (B, C, H, W).  w_fc1: (C//ratio, C, 1, 1), w_fc2: (C, C//ratio, 1, 1)
    1x1-conv weights (no bias).  Returns (B, C, 1, 1) sigmoid attention,
    matching the PyTorch module."""
    B, C, H, W = x.shape
    Cr = w_fc1.shape[0]
    HW = H * W

    # --- tiling / padding decisions -------------------------------------
    # HW tile: multiple of 128 lanes, no larger than the (padded) HW extent.
    hw_tile = max(128, (int(hw_tile) // 128) * 128)
    hw_tile = min(hw_tile, _ceil_to(HW, 128))
    HW_pad = _ceil_to(HW, hw_tile)

    if b_tile is None:
        b_tile = min(B, 8)
    b_tile = max(1, min(b_tile, B))
    B_pad = _ceil_to(B, b_tile)

    # Lane-dense channel dims.
    C_pad = _ceil_to(C, 128)
    Cr_pad = _ceil_to(Cr, 128)

    # --- prepare (zero-padded) operands ---------------------------------
    x_flat = x.reshape(B, C, HW)
    x_flat = jnp.pad(x_flat, ((0, B_pad - B), (0, C_pad - C), (0, HW_pad - HW)))

    # 1x1 convs on a (B, C, 1, 1) tensor are plain matmuls; pre-transpose.
    w1_t = jnp.pad(w_fc1.reshape(Cr, C).T.astype(jnp.float32),
                   ((0, C_pad - C), (0, Cr_pad - Cr)))              # (C_pad, Cr_pad)
    w2_t = jnp.pad(w_fc2.reshape(C, Cr).T.astype(jnp.float32),
                   ((0, Cr_pad - Cr), (0, C_pad - C)))              # (Cr_pad, C_pad)

    grid = (B_pad // b_tile, HW_pad // hw_tile)

    kernel = functools.partial(channel_attention_kernel, inv_hw=1.0 / float(HW))

    out = pl.pallas_call(
        kernel,
        out_shape=jax.ShapeDtypeStruct((B_pad, C_pad), x.dtype),
        grid=grid,
        in_specs=[
            # Streamed, double-buffered x tiles.
            pl.BlockSpec((b_tile, C_pad, hw_tile), lambda i, k: (i, 0, k)),
            # Tiny weights: full-array blocks, fixed block index -> DMA'd once.
            pl.BlockSpec((C_pad, Cr_pad), lambda i, k: (0, 0)),
            pl.BlockSpec((Cr_pad, C_pad), lambda i, k: (0, 0)),
        ],
        out_specs=pl.BlockSpec((b_tile, C_pad), lambda i, k: (i, 0)),
        scratch_shapes=[pltpu.VMEM((b_tile, C_pad), jnp.float32)],
        compiler_params=pltpu.CompilerParams(
            dimension_semantics=("parallel", "arbitrary"),
        ),
    )(x_flat, w1_t, w2_t)

    return out[:B, :C].reshape(B, C, 1, 1)


def reference_channel_attention(x, w_fc1, w_fc2):
    """Pure-JAX reference of the PyTorch forward for validation."""
    B, C, H, W = x.shape
    Cr = w_fc1.shape[0]
    avg = jnp.mean(x, axis=(2, 3))                       # avg_pool -> (B, C)
    mx = jnp.mean(x, axis=(2, 3))                        # "max_pool" (avg per source)
    w1 = w_fc1.reshape(Cr, C)
    w2 = w_fc2.reshape(C, Cr)

    def mlp(p):
        return jnp.maximum(p @ w1.T, 0.0) @ w2.T

    out = mlp(avg) + mlp(mx)
    return jax.nn.sigmoid(out).reshape(B, C, 1, 1)


if __name__ == "__main__":
    # Small deterministic example: batch=2, channels=16, spatial=16x16, ratio=8
    B, C, H, W = 2, 16, 16, 16
    ratio = 8
    Cr = C // ratio

    key = jax.random.PRNGKey(0)
    kx, k1, k2 = jax.random.split(key, 3)
    x = jax.random.normal(kx, (B, C, H, W), dtype=jnp.float32)
    # Conv2d(in_planes, in_planes//ratio, 1, bias=False) weight: (Cr, C, 1, 1)
    w_fc1 = jax.random.normal(k1, (Cr, C, 1, 1), dtype=jnp.float32) * 0.1
    # Conv2d(in_planes//ratio, in_planes, 1, bias=False) weight: (C, Cr, 1, 1)
    w_fc2 = jax.random.normal(k2, (C, Cr, 1, 1), dtype=jnp.float32) * 0.1

    out = channel_attention(x, w_fc1, w_fc2)
    out = jax.block_until_ready(out)

    ref = reference_channel_attention(x, w_fc1, w_fc2)
    assert out.shape == (B, C, 1, 1), out.shape
    assert jnp.allclose(out, ref, atol=1e-5, rtol=1e-5), "mismatch vs reference"

    print("KERNEL_OK")
</pallas_src>

<mosaic_0001>
module attributes {stable_mosaic.version = 11 : i64} {
  func.func @channel_attention_kernel(%arg0: i32, %arg1: i32, %arg2: memref<2x128x256xf32, #tpu.memory_space<vmem>>, %arg3: memref<128x128xf32, #tpu.memory_space<vmem>>, %arg4: memref<128x128xf32, #tpu.memory_space<vmem>>, %arg5: memref<2x128xf32, #tpu.memory_space<vmem>>, %arg6: memref<2x128xf32, #tpu.memory_space<vmem>>) attributes {dimension_semantics = [#tpu.dimension_semantics<parallel>, #tpu.dimension_semantics<arbitrary>], iteration_bounds = array<i64: 1, 1>, scalar_prefetch = 0 : i64, scratch_operands = 1 : i64, tpu.core_type = #tpu.core_type<tc>, window_params = [{transform_indices = @transform_0, window_bounds = array<i64: 2, 128, 256>}, {pipeline_mode = #tpu.pipeline_mode<synchronous>, transform_indices = @transform_1, window_bounds = array<i64: 128, 128>}, {pipeline_mode = #tpu.pipeline_mode<synchronous>, transform_indices = @transform_2, window_bounds = array<i64: 128, 128>}, {transform_indices = @transform_3, window_bounds = array<i64: 2, 128>}]} {
    %c0_i32 = arith.constant 0 : i32
    %0 = arith.cmpi eq, %arg1, %c0_i32 : i32
    %1 = arith.extui %0 : i1 to i32
    %c0_i32_0 = arith.constant 0 : i32
    %2 = arith.cmpi ne, %1, %c0_i32_0 : i32
    scf.if %2 {
      %cst_9 = arith.constant 0.000000e+00 : f32
      %11 = vector.broadcast %cst_9 : f32 to vector<2x128xf32>
      %c0_10 = arith.constant 0 : index
      %c0_11 = arith.constant 0 : index
      %12 = vector.load %arg6[%c0_10, %c0_11] : memref<2x128xf32, #tpu.memory_space<vmem>>, vector<2x128xf32>
      tpu.vector_store %arg6[%c0_10, %c0_11], %11 {strides = array<i32>} : memref<2x128xf32, #tpu.memory_space<vmem>>, vector<2x128xf32>,
    } else {
    }
    %c0 = arith.constant 0 : index
    %c0_1 = arith.constant 0 : index
    %3 = vector.load %arg6[%c0, %c0_1] : memref<2x128xf32, #tpu.memory_space<vmem>>, vector<2x128xf32>
    %c0_2 = arith.constant 0 : index
    %c0_3 = arith.constant 0 : index
    %c0_4 = arith.constant 0 : index
    %4 = vector.load %arg2[%c0_2, %c0_3, %c0_4] : memref<2x128x256xf32, #tpu.memory_space<vmem>>, vector<2x128x256xf32>
    %cst = arith.constant dense<0.000000e+00> : vector<2x128xf32>
    %5 = vector.multi_reduction <add>, %4, %cst [2] : vector<2x128x256xf32> to vector<2x128xf32>
    %6 = arith.addf %3, %5 : vector<2x128xf32>
    %c0_5 = arith.constant 0 : index
    %c0_6 = arith.constant 0 : index
    %7 = vector.load %arg6[%c0_5, %c0_6] : memref<2x128xf32, #tpu.memory_space<vmem>>, vector<2x128xf32>
    tpu.vector_store %arg6[%c0_5, %c0_6], %6 {strides = array<i32>} : memref<2x128xf32, #tpu.memory_space<vmem>>, vector<2x128xf32>,
    %c0_i32_7 = arith.constant 0 : i32
    %8 = arith.cmpi eq, %arg1, %c0_i32_7 : i32
    %9 = arith.extui %8 : i1 to i32
    %c0_i32_8 = arith.constant 0 : i32
    %10 = arith.cmpi ne, %9, %c0_i32_8 : i32
    scf.if %10 {
      %c0_9 = arith.constant 0 : index
      %c0_10 = arith.constant 0 : index
      %11 = vector.load %arg6[%c0_9, %c0_10] : memref<2x128xf32, #tpu.memory_space<vmem>>, vector<2x128xf32>
      %cst_11 = arith.constant 7.812500e-03 : f32
      %12 = vector.broadcast %cst_11 : f32 to vector<2x128xf32>
      %13 = arith.mulf %11, %12 : vector<2x128xf32>
      %c0_12 = arith.constant 0 : index
      %c0_13 = arith.constant 0 : index
      %14 = vector.load %arg3[%c0_12, %c0_13] : memref<128x128xf32, #tpu.memory_space<vmem>>, vector<128x128xf32>
      %cst_14 = arith.constant dense<0.000000e+00> : vector<2x128xf32>
      %15 = tpu.matmul %13, %14, %cst_14 {dimension_numbers = #tpu.dot_dimension_numbers<[1], [0], [0], [1], [0, 0, 1, 1], [], []>} : vector<2x128xf32>, vector<128x128xf32>, vector<2x128xf32> -> vector<2x128xf32>
      %cst_15 = arith.constant 0.000000e+00 : f32
      %16 = vector.broadcast %cst_15 : f32 to vector<2x128xf32>
      %17 = arith.maximumf %15, %16 : vector<2x128xf32>
      %c0_16 = arith.constant 0 : index
      %c0_17 = arith.constant 0 : index
      %18 = vector.load %arg4[%c0_16, %c0_17] : memref<128x128xf32, #tpu.memory_space<vmem>>, vector<128x128xf32>
      %cst_18 = arith.constant dense<0.000000e+00> : vector<2x128xf32>
      %19 = tpu.matmul %17, %18, %cst_18 {dimension_numbers = #tpu.dot_dimension_numbers<[1], [0], [0], [1], [0, 0, 1, 1], [], []>} : vector<2x128xf32>, vector<128x128xf32>, vector<2x128xf32> -> vector<2x128xf32>
      %20 = arith.negf %19 : vector<2x128xf32>
      %21 = math.exp %20 : vector<2x128xf32>
      %cst_19 = arith.constant 1.000000e+00 : f32
      %22 = vector.broadcast %cst_19 : f32 to vector<2x128xf32>
      %23 = arith.addf %22, %21 : vector<2x128xf32>
      %24 = arith.divf %22, %23 : vector<2x128xf32>
      %c0_20 = arith.constant 0 : index
      %c0_21 = arith.constant 0 : index
      %25 = vector.load %arg5[%c0_20, %c0_21] : memref<2x128xf32, #tpu.memory_space<vmem>>, vector<2x128xf32>
      tpu.vector_store %arg5[%c0_20, %c0_21], %24 {strides = array<i32>} : memref<2x128xf32, #tpu.memory_space<vmem>>, vector<2x128xf32>,
    } else {
    }
    return
  }
  func.func @transform_0(%arg0: i32, %arg1: i32) -> (i32, i32, i32) {
    %c0_i32 = arith.constant 0 : i32
    %c0_i32_0 = arith.constant 0 : i32
    return %arg0, %c0_i32, %arg1 : i32, i32, i32
  }
  func.func @transform_1(%arg0: i32, %arg1: i32) -> (i32, i32) {
    %c0_i32 = arith.constant 0 : i32
    %c0_i32_0 = arith.constant 0 : i32
    %c0_i32_1 = arith.constant 0 : i32
    return %c0_i32, %c0_i32_0 : i32, i32
  }
  func.func @transform_2(%arg0: i32, %arg1: i32) -> (i32, i32) {
    %c0_i32 = arith.constant 0 : i32
    %c0_i32_0 = arith.constant 0 : i32
    %c0_i32_1 = arith.constant 0 : i32
    return %c0_i32, %c0_i32_0 : i32, i32
  }
  func.func @transform_3(%arg0: i32, %arg1: i32) -> (i32, i32) {
    %c0_i32 = arith.constant 0 : i32
    %c0_i32_0 = arith.constant 0 : i32
    return %arg0, %c0_i32 : i32, i32
  }
}

</mosaic_0001>

<llo_original>
// kernel: tpu_custom_call.1
$region0: #{tpu_custom_call.1}
  #allocation0 [shape = 'u32[]', space=smem, size = 0x4, offset = 0x4, fixed_abs, tag = 'smem constant byte address 0x4 - core index']
  #allocation1 [shape = 'u32[72,128]{1,0:T(1,128)}', space=vmem, size = 0x9000, scoped, tag = 'internal scratch']
  #allocation2 [shape = 'f32[2,128]{1,0:T(2,128)}', space=vmem, size = 0x400, scoped, tag = 'scratch operand']
  %s0 = inlined_call_operand.hbm [shape: f32[2,128,256], index: 0, kind: input, shape index: {}]
  %s1 = inlined_call_operand.hbm [shape: f32[128,128], index: 1, kind: input, shape index: {}]
  %s2 = inlined_call_operand.hbm [shape: f32[128,128], index: 2, kind: input, shape index: {}]
  %s3 = inlined_call_operand.hbm [shape: f32[2,128], index: 3, kind: output, shape index: {}]
  %s4 = sld [smem:[#allocation0]]
  $region42: #{tpu_custom_call.1} parent=0
    _
  %s6 = ssub.s32 1, %s4
  %s7 = scalar_select 0, %s6, %s4
  $region1: #{tpu_custom_call.1} parent=0
    #allocation3 [shape = 'u8[262144]{0}', space=vmem, size = 0x40000, scoped, tag = 'input window, operand 0, single buffered']
    #allocation4 [shape = 's32[1]{0}', space=sflag, size = 0x4, scoped, tag = 'scoped memory for tpu_custom_call.1']
    #allocation5 [shape = 's32[1]{0}', space=sflag, size = 0x4, scoped, tag = 'scoped memory for tpu_custom_call.1']
    #allocation6 [shape = 'u8[65536]{0}', space=vmem, size = 0x10000, scoped, tag = 'input window, operand 1, single buffered']
    #allocation7 [shape = 's32[1]{0}', space=sflag, size = 0x4, scoped, tag = 'scoped memory for tpu_custom_call.1']
    #allocation8 [shape = 'u8[65536]{0}', space=vmem, size = 0x10000, scoped, tag = 'input window, operand 2, single buffered']
    #allocation9 [shape = 'u8[1024]{0}', space=vmem, size = 0x400, scoped, tag = 'output window, operand 0, single buffered']
    %8 = vsyncpa [#allocation4], 0
    %9 = vsyncpa [#allocation7], 0
    %10 = vsyncpa [#allocation5], 0
    // Predicated region
    $region2: #{tpu_custom_call.1} parent=1 // pred_check
      _
    $region3: #{tpu_custom_call.1} parent=1 // pred_check_branch
      %12 = sbr.rel (0) target = $region5
    $region4: #{tpu_custom_call.1} parent=1 // pred_region
      %14 = vsyncadd [#allocation4], 0
      %s15 = sshll.u32 %s0, 4
      %s16 = int_to_ptr.hbm [resolvable:$true] %s15
      %s17 = sshll.u32 [#allocation3], 4
      %s18 = int_to_ptr.vmem [resolvable:$true] %s17
      %23 = dma.hbm_to_vmem [thread:$0]  %s16, 8192, %s18, [#allocation4], 256, 256, 16
    $region5: #{tpu_custom_call.1} parent=1 // pred_fallthru
      _
    // Predicated region
    $region6: #{tpu_custom_call.1} parent=1 // pred_check
      _
    $region7: #{tpu_custom_call.1} parent=1 // pred_check_branch
      %25 = sbr.rel (0) target = $region9
    $region8: #{tpu_custom_call.1} parent=1 // pred_region
      %27 = vsyncadd [#allocation7], 0
      %s28 = sshll.u32 %s1, 4
      %s29 = int_to_ptr.hbm [resolvable:$true] %s28
      %s30 = sshll.u32 [#allocation6], 4
      %s31 = int_to_ptr.vmem [resolvable:$true] %s30
      %36 = dma.hbm_to_vmem [thread:$0]  %s29, 2048, %s31, [#allocation7], 128, 128, 8
    $region9: #{tpu_custom_call.1} parent=1 // pred_fallthru
      _
    // Predicated region
    $region10: #{tpu_custom_call.1} parent=1 // pred_check
      _
    $region11: #{tpu_custom_call.1} parent=1 // pred_check_branch
      %38 = sbr.rel (0) target = $region13
    $region12: #{tpu_custom_call.1} parent=1 // pred_region
      %40 = vsyncadd [#allocation7], 0
      %s41 = sshll.u32 %s2, 4
      %s42 = int_to_ptr.hbm [resolvable:$true] %s41
      %s43 = sshll.u32 [#allocation8], 4
      %s44 = int_to_ptr.vmem [resolvable:$true] %s43
      %49 = dma.hbm_to_vmem [thread:$0]  %s42, 2048, %s44, [#allocation7], 128, 128, 8
    $region13: #{tpu_custom_call.1} parent=1 // pred_fallthru
      _
    // Predicated region
    $region14: #{tpu_custom_call.1} parent=1 // pred_check
      _
    $region15: #{tpu_custom_call.1} parent=1 // pred_check_branch
      %51 = sbr.rel (0) target = $region17
    $region16: #{tpu_custom_call.1} parent=1 // pred_region
      %53 = dma.done [#allocation4], 8192
    $region17: #{tpu_custom_call.1} parent=1 // pred_fallthru
      _
    // Predicated region
    $region18: #{tpu_custom_call.1} parent=1 // pred_check
      _
    $region19: #{tpu_custom_call.1} parent=1 // pred_check_branch
      %55 = sbr.rel (0) target = $region21
    $region20: #{tpu_custom_call.1} parent=1 // pred_region
      %57 = dma.done [#allocation7], 2048
    $region21: #{tpu_custom_call.1} parent=1 // pred_fallthru
      _
    // Predicated region
    $region22: #{tpu_custom_call.1} parent=1 // pred_check
      _
    $region23: #{tpu_custom_call.1} parent=1 // pred_check_branch
      %59 = sbr.rel (0) target = $region25
    $region24: #{tpu_custom_call.1} parent=1 // pred_region
      %61 = dma.done [#allocation7], 2048
    $region25: #{tpu_custom_call.1} parent=1 // pred_fallthru
      _
    %p62 = scmp.eq.s32.totalorder 0, 0
    // Predicated region
    $region26: #{tpu_custom_call.1} parent=1 // pred_check
      %p63 = pneg %p62
    $region27: #{tpu_custom_call.1} parent=1 // pred_check_branch
      %65 = sbr.rel (%p63) target = $region29
    $region28: #{tpu_custom_call.1} parent=1 // pred_region
      %66 = vst [vmem:[#allocation2] sm:$0x3] 0.0
    $region29: #{tpu_custom_call.1} parent=1 // pred_fallthru
      _
    %v67 = vld [vmem:[#allocation2] sm:$0x3]
    %v68 = vld [vmem:[#allocation3] sm:$0xff]
    %v69 = vld [vmem:[#allocation3 + $0x8] sm:$0xff]
    %v70 = vld [vmem:[#allocation3 + $0x10] sm:$0xff]
    %v71 = vld [vmem:[#allocation3 + $0x18] sm:$0xff]
    %v72 = vld [vmem:[#allocation3 + $0x20] sm:$0xff]
    %v73 = vld [vmem:[#allocation3 + $0x28] sm:$0xff]
    %v74 = vld [vmem:[#allocation3 + $0x30] sm:$0xff]
    %v75 = vld [vmem:[#allocation3 + $0x38] sm:$0xff]
    %v76 = vld [vmem:[#allocation3 + $0x40] sm:$0xff]
    %v77 = vld [vmem:[#allocation3 + $0x48] sm:$0xff]
    %v78 = vld [vmem:[#allocation3 + $0x50] sm:$0xff]
    %v79 = vld [vmem:[#allocation3 + $0x58] sm:$0xff]
    %v80 = vld [vmem:[#allocation3 + $0x60] sm:$0xff]
    %v81 = vld [vmem:[#allocation3 + $0x68] sm:$0xff]
    %v82 = vld [vmem:[#allocation3 + $0x70] sm:$0xff]
    %v83 = vld [vmem:[#allocation3 + $0x78] sm:$0xff]
    %v84 = vld [vmem:[#allocation3 + $0x80] sm:$0xff]
    %v85 = vld [vmem:[#allocation3 + $0x88] sm:$0xff]
    %v86 = vld [vmem:[#allocation3 + $0x90] sm:$0xff]
    %v87 = vld [vmem:[#allocation3 + $0x98] sm:$0xff]
    %v88 = vld [vmem:[#allocation3 + $0xa0] sm:$0xff]
    %v89 = vld [vmem:[#allocation3 + $0xa8] sm:$0xff]
    %v90 = vld [vmem:[#allocation3 + $0xb0] sm:$0xff]
    %v91 = vld [vmem:[#allocation3 + $0xb8] sm:$0xff]
    %v92 = vld [vmem:[#allocation3 + $0xc0] sm:$0xff]
    %v93 = vld [vmem:[#allocation3 + $0xc8] sm:$0xff]
    %v94 = vld [vmem:[#allocation3 + $0xd0] sm:$0xff]
    %v95 = vld [vmem:[#allocation3 + $0xd8] sm:$0xff]
    %v96 = vld [vmem:[#allocation3 + $0xe0] sm:$0xff]
    %v97 = vld [vmem:[#allocation3 + $0xe8] sm:$0xff]
    %v98 = vld [vmem:[#allocation3 + $0xf0] sm:$0xff]
    %v99 = vld [vmem:[#allocation3 + $0xf8] sm:$0xff]
    %v100 = vld [vmem:[#allocation3 + $0x100] sm:$0xff]
    %v101 = vld [vmem:[#allocation3 + $0x108] sm:$0xff]
    %v102 = vld [vmem:[#allocation3 + $0x110] sm:$0xff]
    %v103 = vld [vmem:[#allocation3 + $0x118] sm:$0xff]
    %v104 = vld [vmem:[#allocation3 + $0x120] sm:$0xff]
    %v105 = vld [vmem:[#allocation3 + $0x128] sm:$0xff]
    %v106 = vld [vmem:[#allocation3 + $0x130] sm:$0xff]
    %v107 = vld [vmem:[#allocation3 + $0x138] sm:$0xff]
    %v108 = vld [vmem:[#allocation3 + $0x140] sm:$0xff]
    %v109 = vld [vmem:[#allocation3 + $0x148] sm:$0xff]
    %v110 = vld [vmem:[#allocation3 + $0x150] sm:$0xff]
    %v111 = vld [vmem:[#allocation3 + $0x158] sm:$0xff]
    %v112 = vld [vmem:[#allocation3 + $0x160] sm:$0xff]
    %v113 = vld [vmem:[#allocation3 + $0x168] sm:$0xff]
    %v114 = vld [vmem:[#allocation3 + $0x170] sm:$0xff]
    %v115 = vld [vmem:[#allocation3 + $0x178] sm:$0xff]
    %v116 = vld [vmem:[#allocation3 + $0x180] sm:$0xff]
    %v117 = vld [vmem:[#allocation3 + $0x188] sm:$0xff]
    %v118 = vld [vmem:[#allocation3 + $0x190] sm:$0xff]
    %v119 = vld [vmem:[#allocation3 + $0x198] sm:$0xff]
    %v120 = vld [vmem:[#allocation3 + $0x1a0] sm:$0xff]
    %v121 = vld [vmem:[#allocation3 + $0x1a8] sm:$0xff]
    %v122 = vld [vmem:[#allocation3 + $0x1b0] sm:$0xff]
    %v123 = vld [vmem:[#allocation3 + $0x1b8] sm:$0xff]
    %v124 = vld [vmem:[#allocation3 + $0x1c0] sm:$0xff]
    %v125 = vld [vmem:[#allocation3 + $0x1c8] sm:$0xff]
    %v126 = vld [vmem:[#allocation3 + $0x1d0] sm:$0xff]
    %v127 = vld [vmem:[#allocation3 + $0x1d8] sm:$0xff]
    %v128 = vld [vmem:[#allocation3 + $0x1e0] sm:$0xff]
    %v129 = vld [vmem:[#allocation3 + $0x1e8] sm:$0xff]
    %v130 = vld [vmem:[#allocation3 + $0x1f0] sm:$0xff]
    %v131 = vld [vmem:[#allocation3 + $0x1f8] sm:$0xff]
    %v132 = vadd.f32 %v68, %v69
    %133 = vadd.xlane.f32.xlu0 %v132
    %v134 = vpop.xlane.xlu0 %133
    %v135 = vadd.f32 %v70, %v71
    %136 = vadd.xlane.f32.xlu0 %v135
    %v137 = vpop.xlane.xlu0 %136
    %v138 = vadd.f32 %v72, %v73
    %139 = vadd.xlane.f32.xlu0 %v138
    %v140 = vpop.xlane.xlu0 %139
    %v141 = vadd.f32 %v74, %v75
    %142 = vadd.xlane.f32.xlu0 %v141
    %v143 = vpop.xlane.xlu0 %142
    %v144 = vadd.f32 %v76, %v77
    %145 = vadd.xlane.f32.xlu0 %v144
    %v146 = vpop.xlane.xlu0 %145
    %v147 = vadd.f32 %v78, %v79
    %148 = vadd.xlane.f32.xlu0 %v147
    %v149 = vpop.xlane.xlu0 %148
    %v150 = vadd.f32 %v80, %v81
    %151 = vadd.xlane.f32.xlu0 %v150
    %v152 = vpop.xlane.xlu0 %151
    %v153 = vadd.f32 %v82, %v83
    %154 = vadd.xlane.f32.xlu0 %v153
    %v155 = vpop.xlane.xlu0 %154
    %v156 = vadd.f32 %v84, %v85
    %157 = vadd.xlane.f32.xlu0 %v156
    %v158 = vpop.xlane.xlu0 %157
    %v159 = vadd.f32 %v86, %v87
    %160 = vadd.xlane.f32.xlu0 %v159
    %v161 = vpop.xlane.xlu0 %160
    %v162 = vadd.f32 %v88, %v89
    %163 = vadd.xlane.f32.xlu0 %v162
    %v164 = vpop.xlane.xlu0 %163
    %v165 = vadd.f32 %v90, %v91
    %166 = vadd.xlane.f32.xlu0 %v165
    %v167 = vpop.xlane.xlu0 %166
    %v168 = vadd.f32 %v92, %v93
    %169 = vadd.xlane.f32.xlu0 %v168
    %v170 = vpop.xlane.xlu0 %169
    %v171 = vadd.f32 %v94, %v95
    %172 = vadd.xlane.f32.xlu0 %v171
    %v173 = vpop.xlane.xlu0 %172
    %v174 = vadd.f32 %v96, %v97
    %175 = vadd.xlane.f32.xlu0 %v174
    %v176 = vpop.xlane.xlu0 %175
    %v177 = vadd.f32 %v98, %v99
    %178 = vadd.xlane.f32.xlu0 %v177
    %v179 = vpop.xlane.xlu0 %178
    %v180 = vadd.f32 %v100, %v101
    %181 = vadd.xlane.f32.xlu0 %v180
    %v182 = vpop.xlane.xlu0 %181
    %v183 = vadd.f32 %v102, %v103
    %184 = vadd.xlane.f32.xlu0 %v183
    %v185 = vpop.xlane.xlu0 %184
    %v186 = vadd.f32 %v104, %v105
    %187 = vadd.xlane.f32.xlu0 %v186
    %v188 = vpop.xlane.xlu0 %187
    %v189 = vadd.f32 %v106, %v107
    %190 = vadd.xlane.f32.xlu0 %v189
    %v191 = vpop.xlane.xlu0 %190
    %v192 = vadd.f32 %v108, %v109
    %193 = vadd.xlane.f32.xlu0 %v192
    %v194 = vpop.xlane.xlu0 %193
    %v195 = vadd.f32 %v110, %v111
    %196 = vadd.xlane.f32.xlu0 %v195
    %v197 = vpop.xlane.xlu0 %196
    %v198 = vadd.f32 %v112, %v113
    %199 = vadd.xlane.f32.xlu0 %v198
    %v200 = vpop.xlane.xlu0 %199
    %v201 = vadd.f32 %v114, %v115
    %202 = vadd.xlane.f32.xlu0 %v201
    %v203 = vpop.xlane.xlu0 %202
    %v204 = vadd.f32 %v116, %v117
    %205 = vadd.xlane.f32.xlu0 %v204
    %v206 = vpop.xlane.xlu0 %205
    %v207 = vadd.f32 %v118, %v119
    %208 = vadd.xlane.f32.xlu0 %v207
    %v209 = vpop.xlane.xlu0 %208
    %v210 = vadd.f32 %v120, %v121
    %211 = vadd.xlane.f32.xlu0 %v210
    %v212 = vpop.xlane.xlu0 %211
    %v213 = vadd.f32 %v122, %v123
    %214 = vadd.xlane.f32.xlu0 %v213
    %v215 = vpop.xlane.xlu0 %214
    %v216 = vadd.f32 %v124, %v125
    %217 = vadd.xlane.f32.xlu0 %v216
    %v218 = vpop.xlane.xlu0 %217
    %v219 = vadd.f32 %v126, %v127
    %220 = vadd.xlane.f32.xlu0 %v219
    %v221 = vpop.xlane.xlu0 %220
    %v222 = vadd.f32 %v128, %v129
    %223 = vadd.xlane.f32.xlu0 %v222
    %v224 = vpop.xlane.xlu0 %223
    %v225 = vadd.f32 %v130, %v131
    %226 = vadd.xlane.f32.xlu0 %v225
    %v227 = vpop.xlane.xlu0 %226
    %v260 = vlaneseq
    %v261 = vand.u32 %v260, 127
    %v262 = vperm.slane %v134, %v261
    %v263 = vadd.s32 %v261, 4294967288
    %v264 = vperm.slane %v137, %v263
    %vm265 = vcmask 130112
    %v266 = vsel %vm265, %v264, %v262
    %v267 = vadd.s32 %v261, 4294967280
    %v268 = vperm.slane %v140, %v267
    %vm269 = vcmask 195712
    %v270 = vsel %vm269, %v268, %v266
    %v271 = vadd.s32 %v261, 4294967272
    %v272 = vperm.slane %v143, %v271
    %vm273 = vcmask 261312
    %v274 = vsel %vm273, %v272, %v270
    %v275 = vadd.s32 %v261, 4294967264
    %v276 = vperm.slane %v146, %v275
    %vm277 = vcmask 326912
    %v278 = vsel %vm277, %v276, %v274
    %v279 = vadd.s32 %v261, 4294967256
    %v280 = vperm.slane %v149, %v279
    %vm281 = vcmask 392512
    %v282 = vsel %vm281, %v280, %v278
    %v283 = vadd.s32 %v261, 4294967248
    %v284 = vperm.slane %v152, %v283
    %vm285 = vcmask 458112
    %v286 = vsel %vm285, %v284, %v282
    %v287 = vadd.s32 %v261, 4294967240
    %v288 = vperm.slane %v155, %v287
    %vm289 = vcmask 523712
    %v290 = vsel %vm289, %v288, %v286
    %v291 = vadd.s32 %v261, 4294967232
    %v292 = vperm.slane %v158, %v291
    %vm293 = vcmask 589312
    %v294 = vsel %vm293, %v292, %v290
    %v295 = vadd.s32 %v261, 4294967224
    %v296 = vperm.slane %v161, %v295
    %vm297 = vcmask 654912
    %v298 = vsel %vm297, %v296, %v294
    %v299 = vadd.s32 %v261, 4294967216
    %v300 = vperm.slane %v164, %v299
    %vm301 = vcmask 720512
    %v302 = vsel %vm301, %v300, %v298
    %v303 = vadd.s32 %v261, 4294967208
    %v304 = vperm.slane %v167, %v303
    %vm305 = vcmask 786112
    %v306 = vsel %vm305, %v304, %v302
    %v307 = vadd.s32 %v261, 4294967200
    %v308 = vperm.slane %v170, %v307
    %vm309 = vcmask 851712
    %v310 = vsel %vm309, %v308, %v306
    %v311 = vadd.s32 %v261, 4294967192
    %v312 = vperm.slane %v173, %v311
    %vm313 = vcmask 917312
    %v314 = vsel %vm313, %v312, %v310
    %v315 = vadd.s32 %v261, 4294967184
    %v316 = vperm.slane %v176, %v315
    %vm317 = vcmask 982912
    %v318 = vsel %vm317, %v316, %v314
    %v319 = vadd.s32 %v261, 4294967176
    %v320 = vperm.slane %v179, %v319
    %vm321 = vcmask 1048512
    %v322 = vsel %vm321, %v320, %v318
    %v323 = vperm.slane %v182, %v261
    %v324 = vperm.slane %v185, %v263
    %v325 = vsel %vm265, %v324, %v323
    %v326 = vperm.slane %v188, %v267
    %v327 = vsel %vm269, %v326, %v325
    %v328 = vperm.slane %v191, %v271
    %v329 = vsel %vm273, %v328, %v327
    %v330 = vperm.slane %v194, %v275
    %v331 = vsel %vm277, %v330, %v329
    %v332 = vperm.slane %v197, %v279
    %v333 = vsel %vm281, %v332, %v331
    %v334 = vperm.slane %v200, %v283
    %v335 = vsel %vm285, %v334, %v333
    %v336 = vperm.slane %v203, %v287
    %v337 = vsel %vm289, %v336, %v335
    %v338 = vperm.slane %v206, %v291
    %v339 = vsel %vm293, %v338, %v337
    %v340 = vperm.slane %v209, %v295
    %v341 = vsel %vm297, %v340, %v339
    %v342 = vperm.slane %v212, %v299
    %v343 = vsel %vm301, %v342, %v341
    %v344 = vperm.slane %v215, %v303
    %v345 = vsel %vm305, %v344, %v343
    %v346 = vperm.slane %v218, %v307
    %v347 = vsel %vm309, %v346, %v345
    %v348 = vperm.slane %v221, %v311
    %v349 = vsel %vm313, %v348, %v347
    %v350 = vperm.slane %v224, %v315
    %v351 = vsel %vm317, %v350, %v349
    %v352 = vperm.slane %v227, %v319
    %v353 = vsel %vm321, %v352, %v351
    %vm354 = vcmask 1041409
    %v355 = vsel %vm354, %v353, %v322
    %v357 = vadd.f32 %v67, %v355
    %358 = vst [vmem:[#allocation2] sm:$0x3] %v357
    // Predicated region
    $region30: #{tpu_custom_call.1} parent=1 // pred_check
      %p359 = pneg %p62
    $region31: #{tpu_custom_call.1} parent=1 // pred_check_branch
      %361 = sbr.rel (%p359) target = $region33
    $region32: #{tpu_custom_call.1} parent=1 // pred_region
      %v362 = vld [vmem:[#allocation2] sm:$0x3]
      %v363 = vmul.f32 %v362, 0.0078125
      %v364 = vld [vmem:[#allocation6] sm:$0xff]
      %v365 = vld [vmem:[#allocation6 + $0x8] sm:$0xff]
      %v366 = vld [vmem:[#allocation6 + $0x10] sm:$0xff]
      %v367 = vld [vmem:[#allocation6 + $0x18] sm:$0xff]
      %v368 = vld [vmem:[#allocation6 + $0x20] sm:$0xff]
      %v369 = vld [vmem:[#allocation6 + $0x28] sm:$0xff]
      %v370 = vld [vmem:[#allocation6 + $0x30] sm:$0xff]
      %v371 = vld [vmem:[#allocation6 + $0x38] sm:$0xff]
      %v372 = vld [vmem:[#allocation6 + $0x40] sm:$0xff]
      %v373 = vld [vmem:[#allocation6 + $0x48] sm:$0xff]
      %v374 = vld [vmem:[#allocation6 + $0x50] sm:$0xff]
      %v375 = vld [vmem:[#allocation6 + $0x58] sm:$0xff]
      %v376 = vld [vmem:[#allocation6 + $0x60] sm:$0xff]
      %v377 = vld [vmem:[#allocation6 + $0x68] sm:$0xff]
      %v378 = vld [vmem:[#allocation6 + $0x70] sm:$0xff]
      %v379 = vld [vmem:[#allocation6 + $0x78] sm:$0xff]
      %380 = vmatpush.msra.mxu0 %v379
      %381 = vmatpush.msra.mxu0 %v378
      %382 = vmatpush.msra.mxu0 %v377
      %383 = vmatpush.msra.mxu0 %v376
      %384 = vmatpush.msra.mxu0 %v375
      %385 = vmatpush.msra.mxu0 %v374
      %386 = vmatpush.msra.mxu0 %v373
      %387 = vmatpush.msra.mxu0 %v372
      %388 = vmatpush.msra.mxu0 %v371
      %389 = vmatpush.msra.mxu0 %v370
      %390 = vmatpush.msra.mxu0 %v369
      %391 = vmatpush.msra.mxu0 %v368
      %392 = vmatpush.msra.mxu0 %v367
      %393 = vmatpush.msra.mxu0 %v366
      %394 = vmatpush.msra.mxu0 %v365
      %395 = vmatpush.msra.mxu0 %v364
      %396 = vmatmul.f32.gmra.mxu0 %v363
      %v397 = vpop.f32.mrf.mxu0
      %v398 = vadd.f32 0.0, %v397
      %399 = vdwg.mxu0
      %v400 = vmax.f32 %v398, 0.0
      %v401 = vld [vmem:[#allocation8] sm:$0xff]
      %v402 = vld [vmem:[#allocation8 + $0x8] sm:$0xff]
      %v403 = vld [vmem:[#allocation8 + $0x10] sm:$0xff]
      %v404 = vld [vmem:[#allocation8 + $0x18] sm:$0xff]
      %v405 = vld [vmem:[#allocation8 + $0x20] sm:$0xff]
      %v406 = vld [vmem:[#allocation8 + $0x28] sm:$0xff]
      %v407 = vld [vmem:[#allocation8 + $0x30] sm:$0xff]
      %v408 = vld [vmem:[#allocation8 + $0x38] sm:$0xff]
      %v409 = vld [vmem:[#allocation8 + $0x40] sm:$0xff]
      %v410 = vld [vmem:[#allocation8 + $0x48] sm:$0xff]
      %v411 = vld [vmem:[#allocation8 + $0x50] sm:$0xff]
      %v412 = vld [vmem:[#allocation8 + $0x58] sm:$0xff]
      %v413 = vld [vmem:[#allocation8 + $0x60] sm:$0xff]
      %v414 = vld [vmem:[#allocation8 + $0x68] sm:$0xff]
      %v415 = vld [vmem:[#allocation8 + $0x70] sm:$0xff]
      %v416 = vld [vmem:[#allocation8 + $0x78] sm:$0xff]
      %417 = vmatpush.msra.mxu0 %v416
      %418 = vmatpush.msra.mxu0 %v415
      %419 = vmatpush.msra.mxu0 %v414
      %420 = vmatpush.msra.mxu0 %v413
      %421 = vmatpush.msra.mxu0 %v412
      %422 = vmatpush.msra.mxu0 %v411
      %423 = vmatpush.msra.mxu0 %v410
      %424 = vmatpush.msra.mxu0 %v409
      %425 = vmatpush.msra.mxu0 %v408
      %426 = vmatpush.msra.mxu0 %v407
      %427 = vmatpush.msra.mxu0 %v406
      %428 = vmatpush.msra.mxu0 %v405
      %429 = vmatpush.msra.mxu0 %v404
      %430 = vmatpush.msra.mxu0 %v403
      %431 = vmatpush.msra.mxu0 %v402
      %432 = vmatpush.msra.mxu0 %v401
      %433 = vmatmul.f32.gmra.mxu0 %v400
      %v434 = vpop.f32.mrf.mxu0
      %v435 = vadd.f32 0.0, %v434
      %436 = vdwg.mxu0
      %v437 = vxor.u32 %v435, 2147483648
      %v438 = vmul.f32 %v437, 1.442695
      %v439 = vpow.pop %v438
      %v440 = vadd.f32 %v439, 1.0
      %v441 = vrcp.pop %v440
      %v442 = vmul.f32 %v440, %v441
      %v443 = vsub.f32 1.0, %v442
      %v444 = vmul.f32 %v441, %v443
      %v445 = vadd.f32 %v441, %v444
      %vm446 = vweird.f32 %v440
      %vm447 = vweird.f32 %v441
      %vm448 = vmor %vm446, %vm447
      %v449 = vsel %vm448, %v441, %v445
      %v450 = vand.u32 2147483647, %v440
      %vm451 = vcmp.eq.f32.partialorder %v450, 8.507059e+37
      %v452 = vand.u32 %v440, 2147483648
      %v453 = vor.u32 1.1754944e-38, %v452
      %v454 = vsel %vm451, %v453, %v449
      %v455 = vmul.f32 1.0, %v454
      %456 = vst [vmem:[#allocation9] sm:$0x3] %v455
    $region33: #{tpu_custom_call.1} parent=1 // pred_fallthru
      _
    // Predicated region
    $region34: #{tpu_custom_call.1} parent=1 // pred_check
      _
    $region35: #{tpu_custom_call.1} parent=1 // pred_check_branch
      %458 = sbr.rel (0) target = $region37
    $region36: #{tpu_custom_call.1} parent=1 // pred_region
      %460 = vsyncadd [#allocation5], 0
      %s462 = sshll.u32 [#allocation9], 4
      %s463 = int_to_ptr.vmem [resolvable:$true] %s462
      %s464 = sshll.u32 %s3, 4
      %s465 = int_to_ptr.hbm [resolvable:$true] %s464
      %467 = dma.vmem_to_hbm [thread:$0]  %s463, 32, %s465, [#allocation5]
    $region37: #{tpu_custom_call.1} parent=1 // pred_fallthru
      _
    // Predicated region
    $region38: #{tpu_custom_call.1} parent=1 // pred_check
      _
    $region39: #{tpu_custom_call.1} parent=1 // pred_check_branch
      %469 = sbr.rel (0) target = $region41
    $region40: #{tpu_custom_call.1} parent=1 // pred_region
      %471 = dma.done [#allocation5], 32
    $region41: #{tpu_custom_call.1} parent=1 // pred_fallthru
      _
    %472 = vsyncpa [#allocation4], 1
    %473 = vsyncpa [#allocation7], 1
    %474 = vsyncpa [#allocation5], 1

</llo_original>
